<compile_context>
chip_gen: v5e
topology: v5e:2x2
jax: 0.10.0
libtpu: 0.0.40
codegen_flags: <defaults>
</compile_context>

<pallas_src>
import functools
from typing import NamedTuple, Optional

import jax
import jax.numpy as jnp
from jax.experimental import pallas as pl
from jax.experimental.pallas import tpu as pltpu


def _round_up(a: int, b: int) -> int:
    return (a + b - 1) // b * b


def _cdiv(a: int, b: int) -> int:
    return (a + b - 1) // b


def _choose_tk(kin: int, cap: int = 1024):
    """Pick a 128-multiple reduction tile; prefer the largest (fewer accumulator
    RMW passes / grid steps) while keeping contraction-dim zero-padding <~12.5%."""
    kin128 = _round_up(kin, 128)
    cap = max(128, min(cap, kin128))
    slack = max(128, kin128 // 8)
    tk = 128
    for t in range(128, cap + 1, 128):
        if _round_up(kin128, t) <= kin128 + slack:
            tk = t
    return tk, _round_up(kin, tk)


# ----------------------------- kernels --------------------------------------


def _fc_kernel_multi_k(x_ref, w_ref, b_ref, o_ref, acc_ref):
    # x_ref: (TM, TK)   flattened input tile
    # w_ref: (TK, TN)   pre-transposed weight tile (no in-kernel transpose)
    # b_ref: (1, TN)    f32 bias tile
    # o_ref: (TM, TN)   output tile
    # acc_ref: (TM, TN) f32 accumulator (persists across the K grid axis)
    kk = pl.program_id(2)

    @pl.when(kk == 0)
    def _init():
        acc_ref[...] = jnp.zeros_like(acc_ref)

    acc_ref[...] += jnp.dot(
        x_ref[...], w_ref[...], preferred_element_type=jnp.float32
    )

    @pl.when(kk == pl.num_programs(2) - 1)
    def _finalize():
        y = acc_ref[...] + b_ref[...]              # f32 epilogue (v5e-friendly)
        o_ref[...] = jnp.maximum(y, 0.0).astype(o_ref.dtype)


def _fc_kernel_single_k(x_ref, w_ref, b_ref, o_ref):
    # Whole reduction fits one tile: no K axis, no accumulator scratch.
    y = jnp.dot(x_ref[...], w_ref[...], preferred_element_type=jnp.float32)
    y = y + b_ref[...]
    o_ref[...] = jnp.maximum(y, 0.0).astype(o_ref.dtype)


# ----------------------------- wrapper ---------------------------------------


class _FCConfig(NamedTuple):
    k: int
    h: int
    kin: int
    kin_pad: int
    h_pad: int
    tk: int
    tm_cap: int
    tn_cap: int
    compute_dtype: Optional[str]


@functools.partial(jax.jit, static_argnames=("cfg",))
def _fc_pooler_apply(x, w_t, b_row, cfg: _FCConfig):
    n = x.shape[0]
    kin, kin_pad, h, h_pad, tk = cfg.kin, cfg.kin_pad, cfg.h, cfg.h_pad, cfg.tk
    out_dtype = x.dtype

    x_flat = x.reshape(n, kin)                      # same row-major flatten as nn.Flatten
    if cfg.compute_dtype is not None:
        x_flat = x_flat.astype(cfg.compute_dtype)

    # Batch is padded only to sublane granularity (8). The reduction dim MUST be
    # zero-padded exactly to the tile grid (a partial K block would corrupt valid
    # outputs); N-edge garbage only lands in rows that get sliced away.
    n8 = _round_up(n, 8)
    if (n8, kin_pad) != (n, kin):
        x_flat = jnp.pad(x_flat, ((0, n8 - n), (0, kin_pad - kin)))

    # ---- per-call tile choice (all 8/128 aligned) ----
    tm = min(cfg.tm_cap, n8)
    tn = min(cfg.tn_cap, h_pad)
    grid_i = _cdiv(n8, tm)
    grid_j = _cdiv(h_pad, tn)

    # v7x megacore: ensure >=2 total programs on the parallel axes when the
    # problem is splittable (free on single-TC v5e/v6e).
    if grid_i * grid_j == 1:
        if n8 >= 16:
            tm = _round_up(n8 // 2, 8)
            grid_i = _cdiv(n8, tm)
        elif h_pad >= 256:
            tn = _round_up(h_pad // 2, 128)
            grid_j = _cdiv(h_pad, tn)

    grid_k = kin_pad // tk

    in_itemsize = jnp.dtype(x_flat.dtype).itemsize
    out_itemsize = jnp.dtype(out_dtype).itemsize

    # Truthful traffic: weight is re-read once per i tile, x once per j tile.
    cost = pl.CostEstimate(
        flops=2 * n8 * kin_pad * h_pad,
        transcendentals=0,
        bytes_accessed=(grid_j * n8 * kin_pad * in_itemsize
                        + grid_i * kin_pad * h_pad * in_itemsize
                        + h_pad * 4
                        + n8 * h_pad * out_itemsize),
    )

    # VMEM budget: double-buffered x/w/out tiles + f32 accumulator, with slack.
    # Capped at 60 MiB so it never exceeds v7x's 64 MiB/TC physical VMEM.
    vmem_usage = (2 * (tm * tk + tk * tn) * in_itemsize
                  + 2 * tm * tn * out_itemsize
                  + tm * tn * 4)
    vmem_limit = int(min(60 * 1024 * 1024,
                         max(32 * 1024 * 1024, vmem_usage * 5 // 4 + (4 << 20))))

    if grid_k == 1:
        out = pl.pallas_call(
            _fc_kernel_single_k,
            out_shape=jax.ShapeDtypeStruct((n8, h_pad), out_dtype),
            grid=(grid_i, grid_j),
            in_specs=[
                pl.BlockSpec((tm, tk), lambda i, j: (i, 0)),   # x
                pl.BlockSpec((tk, tn), lambda i, j: (0, j)),   # weight (kin, h)
                pl.BlockSpec((1, tn), lambda i, j: (0, j)),    # bias
            ],
            out_specs=pl.BlockSpec((tm, tn), lambda i, j: (i, j)),
            compiler_params=pltpu.CompilerParams(
                dimension_semantics=("parallel", "parallel"),
                vmem_limit_bytes=vmem_limit,
            ),
            cost_estimate=cost,
        )(x_flat, w_t, b_row)
    else:
        out = pl.pallas_call(
            _fc_kernel_multi_k,
            out_shape=jax.ShapeDtypeStruct((n8, h_pad), out_dtype),
            grid=(grid_i, grid_j, grid_k),
            in_specs=[
                pl.BlockSpec((tm, tk), lambda i, j, kk: (i, kk)),   # x
                pl.BlockSpec((tk, tn), lambda i, j, kk: (kk, j)),   # weight (kin, h)
                pl.BlockSpec((1, tn), lambda i, j, kk: (0, j)),     # bias
            ],
            out_specs=pl.BlockSpec((tm, tn), lambda i, j, kk: (i, j)),
            scratch_shapes=[pltpu.VMEM((tm, tn), jnp.float32)],
            compiler_params=pltpu.CompilerParams(
                dimension_semantics=("parallel", "parallel", "arbitrary"),
                vmem_limit_bytes=vmem_limit,
            ),
            cost_estimate=cost,
        )(x_flat, w_t, b_row)

    if (n8, h_pad) != (n, h):
        out = out[:n, :h]
    return out


class FCPoolerPallas:
    """Pallas-TPU FCPooler: Flatten -> Linear(k*H, H) -> ReLU -> Dropout (eval = id).

    Weight/bias are padded + transposed ONCE here (hoisted out of the per-call
    path): torch-layout (H, k*H) -> (kin_pad, h_pad) so the kernel does a plain
    x @ w contraction with no in-kernel transpose and no per-call weight copy.
    """

    def __init__(self, weight, bias, *, tm_cap=512, tn_cap=1024, tk_cap=1024,
                 compute_dtype=None):
        h, kin = weight.shape
        assert bias.shape == (h,), bias.shape
        assert kin % h == 0, (kin, h)
        k = kin // h

        tk, kin_pad = _choose_tk(kin, tk_cap)
        h_pad = _round_up(h, 128)

        w = weight if compute_dtype is None else weight.astype(compute_dtype)
        w_t = jnp.transpose(w)                                   # (kin, h)
        if (kin_pad, h_pad) != (kin, h):
            w_t = jnp.pad(w_t, ((0, kin_pad - kin), (0, h_pad - h)))
        b_row = bias.astype(jnp.float32)
        if h_pad != h:
            b_row = jnp.pad(b_row, (0, h_pad - h))
        b_row = b_row.reshape(1, h_pad)

        # Materialize once; every forward call reuses these HBM arrays as-is.
        self.w_t = jax.block_until_ready(w_t)
        self.b_row = jax.block_until_ready(b_row)
        self.cfg = _FCConfig(
            k=k, h=h, kin=kin, kin_pad=kin_pad, h_pad=h_pad, tk=tk,
            tm_cap=tm_cap, tn_cap=tn_cap,
            compute_dtype=(None if compute_dtype is None
                           else jnp.dtype(compute_dtype).name),
        )

    def __call__(self, x):
        n, k, h = x.shape
        assert (k, h) == (self.cfg.k, self.cfg.h), (x.shape, self.cfg)
        return _fc_pooler_apply(x, self.w_t, self.b_row, self.cfg)


if __name__ == "__main__":
    key = jax.random.PRNGKey(0)
    kx, kw, kb, kx2, kw2, kb2 = jax.random.split(key, 6)

    # Case 1: small shapes consistent with the module (k tokens of hidden_size);
    # exercises the single-K fast path.
    N, K_TOK, HIDDEN = 2, 8, 32
    x = jax.random.normal(kx, (N, K_TOK, HIDDEN), dtype=jnp.float32)
    weight = jax.random.normal(kw, (HIDDEN, K_TOK * HIDDEN), dtype=jnp.float32) * 0.02
    bias = jax.random.normal(kb, (HIDDEN,), dtype=jnp.float32) * 0.02

    pooler = FCPoolerPallas(weight, bias)
    y = jax.block_until_ready(pooler(x))
    y_ref = jnp.maximum(x.reshape(N, -1) @ weight.T + bias, 0.0)
    assert y.shape == (N, HIDDEN), y.shape
    assert jnp.allclose(y, y_ref, atol=1e-3, rtol=1e-3), float(
        jnp.max(jnp.abs(y - y_ref)))

    # Case 2: exercises the multi-K accumulator path and the megacore tile split.
    N2, K2, H2 = 16, 12, 256
    x2 = jax.random.normal(kx2, (N2, K2, H2), dtype=jnp.float32)
    w2 = jax.random.normal(kw2, (H2, K2 * H2), dtype=jnp.float32) * 0.02
    b2 = jax.random.normal(kb2, (H2,), dtype=jnp.float32) * 0.02

    pooler2 = FCPoolerPallas(w2, b2)
    y2 = jax.block_until_ready(pooler2(x2))
    y2_ref = jnp.maximum(x2.reshape(N2, -1) @ w2.T + b2, 0.0)
    assert y2.shape == (N2, H2), y2.shape
    assert jnp.allclose(y2, y2_ref, atol=5e-3, rtol=5e-3), float(
        jnp.max(jnp.abs(y2 - y2_ref)))

    print("KERNEL_OK")
</pallas_src>

<mosaic_0001>
module attributes {stable_mosaic.version = 11 : i64} {
  func.func @_fc_kernel_single_k(%arg0: i32, %arg1: i32, %arg2: memref<8x256xf32, #tpu.memory_space<vmem>>, %arg3: memref<256x128xf32, #tpu.memory_space<vmem>>, %arg4: memref<1x128xf32, #tpu.memory_space<vmem>>, %arg5: memref<8x128xf32, #tpu.memory_space<vmem>>) attributes {dimension_semantics = [#tpu.dimension_semantics<parallel>, #tpu.dimension_semantics<parallel>], iteration_bounds = array<i64: 1, 1>, scalar_prefetch = 0 : i64, scratch_operands = 0 : i64, tpu.core_type = #tpu.core_type<tc>, window_params = [{transform_indices = @transform_0, window_bounds = array<i64: 8, 256>}, {transform_indices = @transform_1, window_bounds = array<i64: 256, 128>}, {transform_indices = @transform_2, window_bounds = array<i64: 1, 128>}, {transform_indices = @transform_3, window_bounds = array<i64: 8, 128>}]} {
    %c0 = arith.constant 0 : index
    %c0_0 = arith.constant 0 : index
    %0 = vector.load %arg2[%c0, %c0_0] : memref<8x256xf32, #tpu.memory_space<vmem>>, vector<8x256xf32>
    %c0_1 = arith.constant 0 : index
    %c0_2 = arith.constant 0 : index
    %1 = vector.load %arg3[%c0_1, %c0_2] : memref<256x128xf32, #tpu.memory_space<vmem>>, vector<256x128xf32>
    %cst = arith.constant dense<0.000000e+00> : vector<8x128xf32>
    %2 = tpu.matmul %0, %1, %cst {dimension_numbers = #tpu.dot_dimension_numbers<[1], [0], [0], [1], [0, 0, 1, 1], [], []>} : vector<8x256xf32>, vector<256x128xf32>, vector<8x128xf32> -> vector<8x128xf32>
    %c0_3 = arith.constant 0 : index
    %c0_4 = arith.constant 0 : index
    %3 = vector.load %arg4[%c0_3, %c0_4] : memref<1x128xf32, #tpu.memory_space<vmem>>, vector<1x128xf32>
    %4 = vector.broadcast %3 : vector<1x128xf32> to vector<8x128xf32>
    %5 = arith.addf %2, %4 : vector<8x128xf32>
    %cst_5 = arith.constant 0.000000e+00 : f32
    %6 = vector.broadcast %cst_5 : f32 to vector<8x128xf32>
    %7 = arith.maximumf %5, %6 : vector<8x128xf32>
    %c0_6 = arith.constant 0 : index
    %c0_7 = arith.constant 0 : index
    %8 = vector.load %arg5[%c0_6, %c0_7] : memref<8x128xf32, #tpu.memory_space<vmem>>, vector<8x128xf32>
    tpu.vector_store %arg5[%c0_6, %c0_7], %7 {strides = array<i32>} : memref<8x128xf32, #tpu.memory_space<vmem>>, vector<8x128xf32>,
    return
  }
  func.func @transform_0(%arg0: i32, %arg1: i32) -> (i32, i32) {
    %c0_i32 = arith.constant 0 : i32
    %c0_i32_0 = arith.constant 0 : i32
    return %arg0, %c0_i32 : i32, i32
  }
  func.func @transform_1(%arg0: i32, %arg1: i32) -> (i32, i32) {
    %c0_i32 = arith.constant 0 : i32
    %c0_i32_0 = arith.constant 0 : i32
    return %c0_i32, %arg1 : i32, i32
  }
  func.func @transform_2(%arg0: i32, %arg1: i32) -> (i32, i32) {
    %c0_i32 = arith.constant 0 : i32
    %c0_i32_0 = arith.constant 0 : i32
    return %c0_i32, %arg1 : i32, i32
  }
  func.func @transform_3(%arg0: i32, %arg1: i32) -> (i32, i32) {
    %c0_i32 = arith.constant 0 : i32
    return %arg0, %arg1 : i32, i32
  }
}

</mosaic_0001>

<llo_original>
// kernel: _fc_pooler_apply.1
$region0: #{_fc_pooler_apply.1}
  #allocation0 [shape = 'u32[]', space=smem, size = 0x4, offset = 0x4, fixed_abs, tag = 'smem constant byte address 0x4 - core index']
  #allocation1 [shape = 'u32[72,128]{1,0:T(1,128)}', space=vmem, size = 0x9000, scoped, tag = 'internal scratch']
  %s0 = inlined_call_operand.vmem [shape: f32[8,256], index: 0, kind: input, shape index: {}]
  %s1 = inlined_call_operand.hbm [shape: f32[256,128], index: 1, kind: input, shape index: {}]
  %s2 = inlined_call_operand.vmem [shape: f32[1,128], index: 2, kind: input, shape index: {}]
  %s3 = inlined_call_operand.vmem [shape: f32[8,128], index: 3, kind: output, shape index: {}]
  %s4 = sld [smem:[#allocation0]]
  $region26: #{_fc_pooler_apply.1} parent=0
    _
  %s6 = ssub.s32 1, %s4
  %s7 = scalar_select 0, %s6, %s4
  $region1: #{_fc_pooler_apply.1} parent=0
    #allocation2 [shape = 'u8[131072]{0}', space=vmem, size = 0x20000, scoped, tag = 'input window, operand 1, single buffered']
    #allocation3 [shape = 's32[1]{0}', space=sflag, size = 0x4, scoped, tag = 'scoped memory for _fc_pooler_apply.1']
    %8 = vsyncpa [#allocation3], 0
    // Predicated region
    $region2: #{_fc_pooler_apply.1} parent=1 // pred_check
      _
    $region3: #{_fc_pooler_apply.1} parent=1 // pred_check_branch
      %10 = sbr.rel (0) target = $region5
    $region4: #{_fc_pooler_apply.1} parent=1 // pred_region
      _
    $region5: #{_fc_pooler_apply.1} parent=1 // pred_fallthru
      _
    // Predicated region
    $region6: #{_fc_pooler_apply.1} parent=1 // pred_check
      _
    $region7: #{_fc_pooler_apply.1} parent=1 // pred_check_branch
      %12 = sbr.rel (0) target = $region9
    $region8: #{_fc_pooler_apply.1} parent=1 // pred_region
      %14 = vsyncadd [#allocation3], 0
      %s15 = sshll.u32 %s1, 4
      %s16 = int_to_ptr.hbm [resolvable:$true] %s15
      %s17 = sshll.u32 [#allocation2], 4
      %s18 = int_to_ptr.vmem [resolvable:$true] %s17
      %23 = dma.hbm_to_vmem [thread:$0]  %s16, 4096, %s18, [#allocation3], 128, 128, 8
    $region9: #{_fc_pooler_apply.1} parent=1 // pred_fallthru
      _
    // Predicated region
    $region10: #{_fc_pooler_apply.1} parent=1 // pred_check
      _
    $region11: #{_fc_pooler_apply.1} parent=1 // pred_check_branch
      %25 = sbr.rel (0) target = $region13
    $region12: #{_fc_pooler_apply.1} parent=1 // pred_region
      _
    $region13: #{_fc_pooler_apply.1} parent=1 // pred_fallthru
      _
    // Predicated region
    $region14: #{_fc_pooler_apply.1} parent=1 // pred_check
      _
    $region15: #{_fc_pooler_apply.1} parent=1 // pred_check_branch
      %27 = sbr.rel (0) target = $region17
    $region16: #{_fc_pooler_apply.1} parent=1 // pred_region
      %29 = dma.done [#allocation3], 4096
    $region17: #{_fc_pooler_apply.1} parent=1 // pred_fallthru
      _
    %v30 = vld [vmem:[%s0] sm:$0xff]
    %v31 = vld [vmem:[%s0 + $0x8] sm:$0xff]
    %v32 = vld [vmem:[#allocation2] sm:$0xff]
    %v33 = vld [vmem:[#allocation2 + $0x8] sm:$0xff]
    %v34 = vld [vmem:[#allocation2 + $0x10] sm:$0xff]
    %v35 = vld [vmem:[#allocation2 + $0x18] sm:$0xff]
    %v36 = vld [vmem:[#allocation2 + $0x20] sm:$0xff]
    %v37 = vld [vmem:[#allocation2 + $0x28] sm:$0xff]
    %v38 = vld [vmem:[#allocation2 + $0x30] sm:$0xff]
    %v39 = vld [vmem:[#allocation2 + $0x38] sm:$0xff]
    %v40 = vld [vmem:[#allocation2 + $0x40] sm:$0xff]
    %v41 = vld [vmem:[#allocation2 + $0x48] sm:$0xff]
    %v42 = vld [vmem:[#allocation2 + $0x50] sm:$0xff]
    %v43 = vld [vmem:[#allocation2 + $0x58] sm:$0xff]
    %v44 = vld [vmem:[#allocation2 + $0x60] sm:$0xff]
    %v45 = vld [vmem:[#allocation2 + $0x68] sm:$0xff]
    %v46 = vld [vmem:[#allocation2 + $0x70] sm:$0xff]
    %v47 = vld [vmem:[#allocation2 + $0x78] sm:$0xff]
    %v48 = vld [vmem:[#allocation2 + $0x80] sm:$0xff]
    %v49 = vld [vmem:[#allocation2 + $0x88] sm:$0xff]
    %v50 = vld [vmem:[#allocation2 + $0x90] sm:$0xff]
    %v51 = vld [vmem:[#allocation2 + $0x98] sm:$0xff]
    %v52 = vld [vmem:[#allocation2 + $0xa0] sm:$0xff]
    %v53 = vld [vmem:[#allocation2 + $0xa8] sm:$0xff]
    %v54 = vld [vmem:[#allocation2 + $0xb0] sm:$0xff]
    %v55 = vld [vmem:[#allocation2 + $0xb8] sm:$0xff]
    %v56 = vld [vmem:[#allocation2 + $0xc0] sm:$0xff]
    %v57 = vld [vmem:[#allocation2 + $0xc8] sm:$0xff]
    %v58 = vld [vmem:[#allocation2 + $0xd0] sm:$0xff]
    %v59 = vld [vmem:[#allocation2 + $0xd8] sm:$0xff]
    %v60 = vld [vmem:[#allocation2 + $0xe0] sm:$0xff]
    %v61 = vld [vmem:[#allocation2 + $0xe8] sm:$0xff]
    %v62 = vld [vmem:[#allocation2 + $0xf0] sm:$0xff]
    %v63 = vld [vmem:[#allocation2 + $0xf8] sm:$0xff]
    %v64 = vld [vmem:[%s2] sm:$0x1]
    %v66 = vperm.slane %v64, 0
    %68 = vmatpush.msra.mxu0 %v47
    %69 = vmatpush.msra.mxu0 %v46
    %70 = vmatpush.msra.mxu0 %v45
    %71 = vmatpush.msra.mxu0 %v44
    %72 = vmatpush.msra.mxu0 %v43
    %73 = vmatpush.msra.mxu0 %v42
    %74 = vmatpush.msra.mxu0 %v41
    %75 = vmatpush.msra.mxu0 %v40
    %76 = vmatpush.msra.mxu0 %v39
    %77 = vmatpush.msra.mxu0 %v38
    %78 = vmatpush.msra.mxu0 %v37
    %79 = vmatpush.msra.mxu0 %v36
    %80 = vmatpush.msra.mxu0 %v35
    %81 = vmatpush.msra.mxu0 %v34
    %82 = vmatpush.msra.mxu0 %v33
    %83 = vmatpush.msra.mxu0 %v32
    %84 = vmatmul.f32.gmra.mxu0 %v30
    %v85 = vpop.f32.mrf.mxu0
    %v86 = vadd.f32 %v66, %v85
    %87 = vdwg.mxu0
    %88 = vmatpush.msra.mxu0 %v63
    %89 = vmatpush.msra.mxu0 %v62
    %90 = vmatpush.msra.mxu0 %v61
    %91 = vmatpush.msra.mxu0 %v60
    %92 = vmatpush.msra.mxu0 %v59
    %93 = vmatpush.msra.mxu0 %v58
    %94 = vmatpush.msra.mxu0 %v57
    %95 = vmatpush.msra.mxu0 %v56
    %96 = vmatpush.msra.mxu0 %v55
    %97 = vmatpush.msra.mxu0 %v54
    %98 = vmatpush.msra.mxu0 %v53
    %99 = vmatpush.msra.mxu0 %v52
    %100 = vmatpush.msra.mxu0 %v51
    %101 = vmatpush.msra.mxu0 %v50
    %102 = vmatpush.msra.mxu0 %v49
    %103 = vmatpush.msra.mxu0 %v48
    %104 = vmatmul.f32.gmra.mxu0 %v31
    %v105 = vpop.f32.mrf.mxu0
    %v106 = vadd.f32 %v86, %v105
    %107 = vdwg.mxu0
    %v108 = vmax.f32 %v106, 0.0
    %109 = vst [vmem:[%s3] sm:$0xff] %v108
    // Predicated region
    $region18: #{_fc_pooler_apply.1} parent=1 // pred_check
      _
    $region19: #{_fc_pooler_apply.1} parent=1 // pred_check_branch
      %111 = sbr.rel (0) target = $region21
    $region20: #{_fc_pooler_apply.1} parent=1 // pred_region
      _
    $region21: #{_fc_pooler_apply.1} parent=1 // pred_fallthru
      _
    // Predicated region
    $region22: #{_fc_pooler_apply.1} parent=1 // pred_check
      _
    $region23: #{_fc_pooler_apply.1} parent=1 // pred_check_branch
      %113 = sbr.rel (0) target = $region25
    $region24: #{_fc_pooler_apply.1} parent=1 // pred_region
      _
    $region25: #{_fc_pooler_apply.1} parent=1 // pred_fallthru
      _
    %114 = vsyncpa [#allocation3], 1

</llo_original>
